<compile_context>
chip_gen: v5e
topology: v5e:2x2
jax: 0.10.0
libtpu: 0.0.40
codegen_flags: <defaults>
</compile_context>

<pallas_src>
import functools

import jax
import jax.numpy as jnp
from jax import lax
from jax.experimental import pallas as pl
from jax.experimental.pallas import tpu as pltpu


_NEG_INF = -1e30  # finite mask value: avoids NaN from (-inf) - (-inf)


def _round_up(x, m):
    return ((x + m - 1) // m) * m


def _clamp_block(block, dim, align=8):
    """Clamp a block size to the array dim, keeping sublane alignment when tiling."""
    if block >= dim:
        return dim                      # single block == full dim (always legal)
    return max(align, (block // align) * align)


def _flash_attn_kernel(inv_temp_ref, lk_ref, q_ref, k_ref, v_ref, o_ref,
                       q_sc, m_sc, l_sc, acc_sc, *, mask_kv, compute_dtype):
    """One grid step: one (batch, q-tile, kv-tile) block.

    inv_temp_ref : SMEM (1,) f32    -- 1 / temperature
    lk_ref       : SMEM (1,) i32    -- true kv length (for ragged last kv tile)
    q_ref        : VMEM (tq, D)
    k_ref        : VMEM (tk, D)
    v_ref        : VMEM (tk, Dv_p)
    o_ref        : VMEM (tq, Dv_p)
    q_sc         : VMEM (tq, D)     -- Q * (1/T), cached across kv steps
    m_sc, l_sc   : VMEM (tq, 1) f32 -- running max / denominator
    acc_sc       : VMEM (tq, Dv_p) f32 -- running numerator
    """
    kv = pl.program_id(2)

    @pl.when(kv == 0)
    def _init():
        # Scale Q once per q-tile (reused for every kv step).
        q_sc[...] = (q_ref[...].astype(jnp.float32)
                     * inv_temp_ref[0]).astype(compute_dtype)
        m_sc[...] = jnp.full(m_sc.shape, -jnp.inf, dtype=m_sc.dtype)
        l_sc[...] = jnp.zeros(l_sc.shape, dtype=l_sc.dtype)
        acc_sc[...] = jnp.zeros(acc_sc.shape, dtype=acc_sc.dtype)

    k = k_ref[...].astype(compute_dtype)

    # scores = q @ k^T via dot_general contracting the feature axis of both
    # operands -> no explicit transpose of the K tile.
    scores = lax.dot_general(
        q_sc[...], k, (((1,), (1,)), ((), ())),
        preferred_element_type=jnp.float32)                      # (tq, tk)

    v = v_ref[...]
    if mask_kv:
        tk = k_ref.shape[0]
        base = kv * tk
        lk = lk_ref[0]
        # (1, tk) column validity, broadcast over the q rows.
        col_valid = (lax.broadcasted_iota(jnp.int32, (1, tk), 1) + base) < lk
        scores = jnp.where(col_valid, scores, _NEG_INF)
        # Zero out-of-range V rows so garbage in the ragged tail of the block
        # cannot poison the PV matmul (exp() already gives exactly 0 weights).
        row_valid = (lax.broadcasted_iota(jnp.int32, (tk, 1), 0) + base) < lk
        v = jnp.where(row_valid, v, 0)
    v = v.astype(compute_dtype)

    # Online (flash) softmax update.
    m_prev = m_sc[...]
    m_new = jnp.maximum(m_prev, jnp.max(scores, axis=-1, keepdims=True))
    alpha = jnp.exp(m_prev - m_new)
    p = jnp.exp(scores - m_new)
    l_sc[...] = alpha * l_sc[...] + jnp.sum(p, axis=-1, keepdims=True)
    acc_sc[...] = alpha * acc_sc[...] + jnp.dot(
        p.astype(compute_dtype), v, preferred_element_type=jnp.float32)
    m_sc[...] = m_new

    @pl.when(kv == pl.num_programs(2) - 1)
    def _finalize():
        l = l_sc[...]
        inv_l = pl.reciprocal(l, approx=True)      # EUP vrcp
        inv_l = inv_l * (2.0 - l * inv_l)          # one Newton step -> f32 accuracy
        o_ref[...] = (acc_sc[...] * inv_l).astype(o_ref.dtype)


def attention(query, key, value, temperature=None, *,
              block_q=512, block_k=1024, use_bf16_matmul=False):
    """Pallas equivalent of Attention.forward(query, key, value, temperature)."""
    if temperature is None:
        temperature = float(key.shape[-1]) ** 0.5

    B, Lq, D = query.shape
    Bk, Lk, Dk = key.shape
    Bv, Lkv, Dv = value.shape
    assert B == Bk == Bv and D == Dk and Lk == Lkv

    out_dtype = query.dtype
    compute_dtype = jnp.bfloat16 if use_bf16_matmul else query.dtype

    block_q = _clamp_block(block_q, Lq)
    block_k = _clamp_block(block_k, Lk)

    nq = pl.cdiv(Lq, block_q)
    nk = pl.cdiv(Lk, block_k)
    mask_kv = (Lk % block_k) != 0          # only the last kv tile can be ragged

    # Keep V's feature dim a multiple of 128 for lane-dense output stores;
    # Q/K feature dim D stays unpadded (block dim == full array dim is legal).
    Dv_p = Dv if Dv % 128 == 0 else _round_up(Dv, 128)
    v_in = value if Dv_p == Dv else jnp.pad(value, ((0, 0), (0, 0), (0, Dv_p - Dv)))

    inv_temp = (1.0 / jnp.asarray(temperature, dtype=jnp.float32)).reshape(1)
    lk_arr = jnp.asarray([Lk], dtype=jnp.int32)

    grid_spec = pltpu.PrefetchScalarGridSpec(
        num_scalar_prefetch=0,
        grid=(B, nq, nk),
        in_specs=[
            pl.BlockSpec(memory_space=pltpu.MemorySpace.SMEM),       # 1/temperature
            pl.BlockSpec(memory_space=pltpu.MemorySpace.SMEM),       # true Lk
            pl.BlockSpec((pl.Squeezed(), block_q, D),
                         lambda b, qi, ki: (b, qi, 0)),              # Q
            pl.BlockSpec((pl.Squeezed(), block_k, D),
                         lambda b, qi, ki: (b, ki, 0)),              # K
            pl.BlockSpec((pl.Squeezed(), block_k, Dv_p),
                         lambda b, qi, ki: (b, ki, 0)),              # V
        ],
        out_specs=pl.BlockSpec((pl.Squeezed(), block_q, Dv_p),
                               lambda b, qi, ki: (b, qi, 0)),
        scratch_shapes=[
            pltpu.VMEM((block_q, D), compute_dtype),     # scaled Q cache
            pltpu.VMEM((block_q, 1), jnp.float32),       # running max
            pltpu.VMEM((block_q, 1), jnp.float32),       # running denom
            pltpu.VMEM((block_q, Dv_p), jnp.float32),    # running numerator
        ],
    )

    out = pl.pallas_call(
        functools.partial(_flash_attn_kernel,
                          mask_kv=mask_kv, compute_dtype=compute_dtype),
        out_shape=jax.ShapeDtypeStruct((B, Lq, Dv_p), out_dtype),
        grid_spec=grid_spec,
        compiler_params=pltpu.CompilerParams(
            dimension_semantics=("parallel", "parallel", "arbitrary"),
            vmem_limit_bytes=48 * 1024 * 1024,
        ),
    )(inv_temp, lk_arr, query, key, v_in)

    if Dv_p != Dv:
        out = out[..., :Dv]
    return out


def _attention_ref(query, key, value, temperature=None):
    """Pure-JAX reference matching the PyTorch module."""
    if temperature is None:
        temperature = float(key.shape[-1]) ** 0.5
    attn = jnp.matmul(query, jnp.swapaxes(key, -1, -2)) / temperature
    attn = jax.nn.softmax(attn, axis=-1)
    return jnp.matmul(attn, value)


if __name__ == "__main__":
    rng = jax.random.PRNGKey(0)
    k1, k2, k3, k4, k5, k6 = jax.random.split(rng, 6)

    # Small shapes consistent with the module: [batch, seq, feature].
    B, Lq, Lk, D = 2, 8, 8, 32
    q = jax.random.normal(k1, (B, Lq, D), dtype=jnp.float32)
    k = jax.random.normal(k2, (B, Lk, D), dtype=jnp.float32)
    v = jax.random.normal(k3, (B, Lk, D), dtype=jnp.float32)

    # temperature=None -> default sqrt(feature_dim), as in the PyTorch module.
    out = jax.block_until_ready(attention(q, k, v, temperature=None))
    ref = _attention_ref(q, k, v, temperature=None)
    assert out.shape == ref.shape
    assert jnp.allclose(out, ref, atol=1e-4, rtol=1e-4), "mismatch vs reference"

    # Explicit temperature.
    out2 = jax.block_until_ready(attention(q, k, v, temperature=2.0))
    ref2 = _attention_ref(q, k, v, temperature=2.0)
    assert jnp.allclose(out2, ref2, atol=1e-4, rtol=1e-4), "mismatch (temp=2.0)"

    # Ragged / multi-tile case: exercises the in-kernel kv column mask, the
    # ragged q tail (out-of-bounds output rows dropped by Pallas) and the
    # multi-step online-softmax accumulation -- all without wrapper-side
    # sequence padding.
    B2, Lq2, Lk2, D2, Dv2 = 2, 40, 200, 32, 48
    q2 = jax.random.normal(k4, (B2, Lq2, D2), dtype=jnp.float32)
    k2_ = jax.random.normal(k5, (B2, Lk2, D2), dtype=jnp.float32)
    v2 = jax.random.normal(k6, (B2, Lk2, Dv2), dtype=jnp.float32)
    out3 = jax.block_until_ready(
        attention(q2, k2_, v2, temperature=None, block_q=16, block_k=128))
    ref3 = _attention_ref(q2, k2_, v2, temperature=None)
    assert out3.shape == ref3.shape
    assert jnp.allclose(out3, ref3, atol=1e-4, rtol=1e-4), "mismatch (ragged)"

    # Optional low-precision MXU path (bf16 matmuls, f32 accumulation/softmax);
    # looser tolerance is expected.
    out4 = jax.block_until_ready(
        attention(q, k, v, temperature=None, use_bf16_matmul=True))
    assert jnp.allclose(out4, ref, atol=5e-2, rtol=5e-2), "mismatch (bf16 path)"

    print("KERNEL_OK")
</pallas_src>

<mosaic_0001>
module attributes {stable_mosaic.version = 11 : i64} {
  func.func @_flash_attn_kernel(%arg0: i32, %arg1: i32, %arg2: i32, %arg3: memref<1xf32, #tpu.memory_space<smem>>, %arg4: memref<1xi32, #tpu.memory_space<smem>>, %arg5: memref<1x8x32xf32, #tpu.memory_space<vmem>>, %arg6: memref<1x8x32xf32, #tpu.memory_space<vmem>>, %arg7: memref<1x8x128xf32, #tpu.memory_space<vmem>>, %arg8: memref<1x8x128xf32, #tpu.memory_space<vmem>>, %arg9: memref<8x32xf32, #tpu.memory_space<vmem>>, %arg10: memref<8x1xf32, #tpu.memory_space<vmem>>, %arg11: memref<8x1xf32, #tpu.memory_space<vmem>>, %arg12: memref<8x128xf32, #tpu.memory_space<vmem>>) attributes {dimension_semantics = [#tpu.dimension_semantics<parallel>, #tpu.dimension_semantics<parallel>, #tpu.dimension_semantics<arbitrary>], iteration_bounds = array<i64: 2, 1, 1>, scalar_prefetch = 0 : i64, scratch_operands = 4 : i64, tpu.core_type = #tpu.core_type<tc>, window_params = [{transform_indices = @transform_0, window_bounds = array<i64: 1>}, {transform_indices = @transform_1, window_bounds = array<i64: 1>}, {transform_indices = @transform_2, window_bounds = array<i64: 1, 8, 32>}, {transform_indices = @transform_3, window_bounds = array<i64: 1, 8, 32>}, {transform_indices = @transform_4, window_bounds = array<i64: 1, 8, 128>}, {transform_indices = @transform_5, window_bounds = array<i64: 1, 8, 128>}]} {
    %c0_i32 = arith.constant 0 : i32
    %0 = arith.cmpi eq, %arg2, %c0_i32 : i32
    %1 = arith.extui %0 : i1 to i32
    %c0_i32_0 = arith.constant 0 : i32
    %2 = arith.cmpi ne, %1, %c0_i32_0 : i32
    scf.if %2 {
      %c0_25 = arith.constant 0 : index
      %c0_26 = arith.constant 0 : index
      %c0_27 = arith.constant 0 : index
      %34 = vector.load %arg5[%c0_25, %c0_26, %c0_27] : memref<1x8x32xf32, #tpu.memory_space<vmem>>, vector<1x8x32xf32>
      %35 = vector.shape_cast %34 : vector<1x8x32xf32> to vector<8x32xf32>
      %c0_28 = arith.constant 0 : index
      %36 = memref.load %arg3[%c0_28] : memref<1xf32, #tpu.memory_space<smem>>
      %37 = vector.broadcast %36 : f32 to vector<8x32xf32>
      %38 = arith.mulf %35, %37 : vector<8x32xf32>
      %c0_29 = arith.constant 0 : index
      %c0_30 = arith.constant 0 : index
      %39 = vector.load %arg9[%c0_29, %c0_30] : memref<8x32xf32, #tpu.memory_space<vmem>>, vector<8x32xf32>
      tpu.vector_store %arg9[%c0_29, %c0_30], %38 {strides = array<i32>} : memref<8x32xf32, #tpu.memory_space<vmem>>, vector<8x32xf32>,
      %cst_31 = arith.constant 0xFF800000 : f32
      %40 = vector.broadcast %cst_31 : f32 to vector<8x1xf32>
      %c0_32 = arith.constant 0 : index
      %c0_33 = arith.constant 0 : index
      %41 = vector.load %arg10[%c0_32, %c0_33] : memref<8x1xf32, #tpu.memory_space<vmem>>, vector<8x1xf32>
      tpu.vector_store %arg10[%c0_32, %c0_33], %40 {strides = array<i32>} : memref<8x1xf32, #tpu.memory_space<vmem>>, vector<8x1xf32>,
      %cst_34 = arith.constant 0.000000e+00 : f32
      %42 = vector.broadcast %cst_34 : f32 to vector<8x1xf32>
      %c0_35 = arith.constant 0 : index
      %c0_36 = arith.constant 0 : index
      %43 = vector.load %arg11[%c0_35, %c0_36] : memref<8x1xf32, #tpu.memory_space<vmem>>, vector<8x1xf32>
      tpu.vector_store %arg11[%c0_35, %c0_36], %42 {strides = array<i32>} : memref<8x1xf32, #tpu.memory_space<vmem>>, vector<8x1xf32>,
      %cst_37 = arith.constant 0.000000e+00 : f32
      %44 = vector.broadcast %cst_37 : f32 to vector<8x128xf32>
      %c0_38 = arith.constant 0 : index
      %c0_39 = arith.constant 0 : index
      %45 = vector.load %arg12[%c0_38, %c0_39] : memref<8x128xf32, #tpu.memory_space<vmem>>, vector<8x128xf32>
      tpu.vector_store %arg12[%c0_38, %c0_39], %44 {strides = array<i32>} : memref<8x128xf32, #tpu.memory_space<vmem>>, vector<8x128xf32>,
    } else {
    }
    %c0 = arith.constant 0 : index
    %c0_1 = arith.constant 0 : index
    %c0_2 = arith.constant 0 : index
    %3 = vector.load %arg6[%c0, %c0_1, %c0_2] : memref<1x8x32xf32, #tpu.memory_space<vmem>>, vector<1x8x32xf32>
    %4 = vector.shape_cast %3 : vector<1x8x32xf32> to vector<8x32xf32>
    %c0_3 = arith.constant 0 : index
    %c0_4 = arith.constant 0 : index
    %5 = vector.load %arg9[%c0_3, %c0_4] : memref<8x32xf32, #tpu.memory_space<vmem>>, vector<8x32xf32>
    %cst = arith.constant dense<0.000000e+00> : vector<8x8xf32>
    %6 = tpu.matmul %5, %4, %cst {dimension_numbers = #tpu.dot_dimension_numbers<[1], [1], [0], [0], [0, 0, 1, 0], [], []>} : vector<8x32xf32>, vector<8x32xf32>, vector<8x8xf32> -> vector<8x8xf32>
    %c0_5 = arith.constant 0 : index
    %c0_6 = arith.constant 0 : index
    %c0_7 = arith.constant 0 : index
    %7 = vector.load %arg7[%c0_5, %c0_6, %c0_7] : memref<1x8x128xf32, #tpu.memory_space<vmem>>, vector<1x8x128xf32>
    %8 = vector.shape_cast %7 : vector<1x8x128xf32> to vector<8x128xf32>
    %c0_8 = arith.constant 0 : index
    %c0_9 = arith.constant 0 : index
    %9 = vector.load %arg10[%c0_8, %c0_9] : memref<8x1xf32, #tpu.memory_space<vmem>>, vector<8x1xf32>
    %cst_10 = arith.constant dense<0xFF800000> : vector<8xf32>
    %10 = vector.multi_reduction <maximumf>, %6, %cst_10 [1] : vector<8x8xf32> to vector<8xf32>
    %11 = vector.shape_cast %10 : vector<8xf32> to vector<8x1xf32>
    %12 = arith.maximumf %9, %11 : vector<8x1xf32>
    %13 = arith.subf %9, %12 : vector<8x1xf32>
    %14 = math.exp %13 : vector<8x1xf32>
    %15 = vector.broadcast %12 : vector<8x1xf32> to vector<8x8xf32>
    %16 = arith.subf %6, %15 : vector<8x8xf32>
    %17 = math.exp %16 : vector<8x8xf32>
    %c0_11 = arith.constant 0 : index
    %c0_12 = arith.constant 0 : index
    %18 = vector.load %arg11[%c0_11, %c0_12] : memref<8x1xf32, #tpu.memory_space<vmem>>, vector<8x1xf32>
    %19 = arith.mulf %14, %18 : vector<8x1xf32>
    %cst_13 = arith.constant dense<0.000000e+00> : vector<8xf32>
    %20 = vector.multi_reduction <add>, %17, %cst_13 [1] : vector<8x8xf32> to vector<8xf32>
    %21 = vector.shape_cast %20 : vector<8xf32> to vector<8x1xf32>
    %22 = arith.addf %19, %21 : vector<8x1xf32>
    %c0_14 = arith.constant 0 : index
    %c0_15 = arith.constant 0 : index
    %23 = vector.load %arg11[%c0_14, %c0_15] : memref<8x1xf32, #tpu.memory_space<vmem>>, vector<8x1xf32>
    tpu.vector_store %arg11[%c0_14, %c0_15], %22 {strides = array<i32>} : memref<8x1xf32, #tpu.memory_space<vmem>>, vector<8x1xf32>,
    %c0_16 = arith.constant 0 : index
    %c0_17 = arith.constant 0 : index
    %24 = vector.load %arg12[%c0_16, %c0_17] : memref<8x128xf32, #tpu.memory_space<vmem>>, vector<8x128xf32>
    %25 = vector.broadcast %14 : vector<8x1xf32> to vector<8x128xf32>
    %26 = arith.mulf %25, %24 : vector<8x128xf32>
    %cst_18 = arith.constant dense<0.000000e+00> : vector<8x128xf32>
    %27 = tpu.matmul %17, %8, %cst_18 {dimension_numbers = #tpu.dot_dimension_numbers<[1], [0], [0], [1], [0, 0, 1, 1], [], []>} : vector<8x8xf32>, vector<8x128xf32>, vector<8x128xf32> -> vector<8x128xf32>
    %28 = arith.addf %26, %27 : vector<8x128xf32>
    %c0_19 = arith.constant 0 : index
    %c0_20 = arith.constant 0 : index
    %29 = vector.load %arg12[%c0_19, %c0_20] : memref<8x128xf32, #tpu.memory_space<vmem>>, vector<8x128xf32>
    tpu.vector_store %arg12[%c0_19, %c0_20], %28 {strides = array<i32>} : memref<8x128xf32, #tpu.memory_space<vmem>>, vector<8x128xf32>,
    %c0_21 = arith.constant 0 : index
    %c0_22 = arith.constant 0 : index
    %30 = vector.load %arg10[%c0_21, %c0_22] : memref<8x1xf32, #tpu.memory_space<vmem>>, vector<8x1xf32>
    tpu.vector_store %arg10[%c0_21, %c0_22], %12 {strides = array<i32>} : memref<8x1xf32, #tpu.memory_space<vmem>>, vector<8x1xf32>,
    %c0_i32_23 = arith.constant 0 : i32
    %31 = arith.cmpi eq, %arg2, %c0_i32_23 : i32
    %32 = arith.extui %31 : i1 to i32
    %c0_i32_24 = arith.constant 0 : i32
    %33 = arith.cmpi ne, %32, %c0_i32_24 : i32
    scf.if %33 {
      %c0_25 = arith.constant 0 : index
      %c0_26 = arith.constant 0 : index
      %34 = vector.load %arg11[%c0_25, %c0_26] : memref<8x1xf32, #tpu.memory_space<vmem>>, vector<8x1xf32>
      %35 = tpu.reciprocal %34 {approx = true} : vector<8x1xf32> -> vector<8x1xf32>
      %36 = arith.mulf %34, %35 : vector<8x1xf32>
      %cst_27 = arith.constant 2.000000e+00 : f32
      %37 = vector.broadcast %cst_27 : f32 to vector<8x1xf32>
      %38 = arith.subf %37, %36 : vector<8x1xf32>
      %39 = arith.mulf %35, %38 : vector<8x1xf32>
      %c0_28 = arith.constant 0 : index
      %c0_29 = arith.constant 0 : index
      %40 = vector.load %arg12[%c0_28, %c0_29] : memref<8x128xf32, #tpu.memory_space<vmem>>, vector<8x128xf32>
      %41 = vector.broadcast %39 : vector<8x1xf32> to vector<8x128xf32>
      %42 = arith.mulf %40, %41 : vector<8x128xf32>
      %c0_30 = arith.constant 0 : index
      %c0_31 = arith.constant 0 : index
      %c0_32 = arith.constant 0 : index
      %43 = vector.load %arg8[%c0_30, %c0_31, %c0_32] : memref<1x8x128xf32, #tpu.memory_space<vmem>>, vector<1x8x128xf32>
      %44 = vector.shape_cast %43 : vector<1x8x128xf32> to vector<8x128xf32>
      %45 = vector.shape_cast %42 : vector<8x128xf32> to vector<1x8x128xf32>
      tpu.vector_store %arg8[%c0_30, %c0_31, %c0_32], %45 {strides = array<i32>} : memref<1x8x128xf32, #tpu.memory_space<vmem>>, vector<1x8x128xf32>,
    } else {
    }
    return
  }
  func.func @transform_0(%arg0: i32, %arg1: i32, %arg2: i32) -> i32 {
    %c0_i32 = arith.constant 0 : i32
    %c0_i32_0 = arith.constant 0 : i32
    return %c0_i32 : i32
  }
  func.func @transform_1(%arg0: i32, %arg1: i32, %arg2: i32) -> i32 {
    %c0_i32 = arith.constant 0 : i32
    %c0_i32_0 = arith.constant 0 : i32
    return %c0_i32 : i32
  }
  func.func @transform_2(%arg0: i32, %arg1: i32, %arg2: i32) -> (i32, i32, i32) {
    %c0_i32 = arith.constant 0 : i32
    %c0_i32_0 = arith.constant 0 : i32
    return %arg0, %arg1, %c0_i32 : i32, i32, i32
  }
  func.func @transform_3(%arg0: i32, %arg1: i32, %arg2: i32) -> (i32, i32, i32) {
    %c0_i32 = arith.constant 0 : i32
    %c0_i32_0 = arith.constant 0 : i32
    return %arg0, %arg2, %c0_i32 : i32, i32, i32
  }
  func.func @transform_4(%arg0: i32, %arg1: i32, %arg2: i32) -> (i32, i32, i32) {
    %c0_i32 = arith.constant 0 : i32
    %c0_i32_0 = arith.constant 0 : i32
    return %arg0, %arg2, %c0_i32 : i32, i32, i32
  }
  func.func @transform_5(%arg0: i32, %arg1: i32, %arg2: i32) -> (i32, i32, i32) {
    %c0_i32 = arith.constant 0 : i32
    %c0_i32_0 = arith.constant 0 : i32
    return %arg0, %arg1, %c0_i32 : i32, i32, i32
  }
}

</mosaic_0001>

<llo_original>
// kernel: tpu_custom_call.1
$region0: #{tpu_custom_call.1}
  #allocation0 [shape = 'u32[]', space=smem, size = 0x4, offset = 0x4, fixed_abs, tag = 'smem constant byte address 0x4 - core index']
  #allocation1 [shape = 'u32[72,128]{1,0:T(1,128)}', space=vmem, size = 0x9000, scoped, tag = 'internal scratch']
  #allocation2 [shape = 'f32[8,32]{1,0:T(8,128)}', space=vmem, size = 0x1000, scoped, tag = 'scratch operand']
  #allocation3 [shape = 'f32[8,1]{1,0:T(8,128)}', space=vmem, size = 0x1000, scoped, tag = 'scratch operand']
  #allocation4 [shape = 'f32[8,1]{1,0:T(8,128)}', space=vmem, size = 0x1000, scoped, tag = 'scratch operand']
  #allocation5 [shape = 'f32[8,128]{1,0:T(8,128)}', space=vmem, size = 0x1000, scoped, tag = 'scratch operand']
  #allocation6 [shape = 'f32[1]{0:T(128)S(6)}', space=smem, size = 0x200, scoped, tag = 'scoped memory for tpu_custom_call.1']
  #allocation7 [shape = 's32[1]{0:T(128)S(6)}', space=smem, size = 0x200, scoped, tag = 'scoped memory for tpu_custom_call.1']
  %s0 = inlined_call_operand.<no memory space> [shape: f32[1], index: 0, kind: input, shape index: {}]
  %s1 = inlined_call_operand.<no memory space> [shape: s32[1], index: 1, kind: input, shape index: {}]
  %s2 = inlined_call_operand.hbm [shape: f32[2,8,32], index: 2, kind: input, shape index: {}]
  %s3 = inlined_call_operand.hbm [shape: f32[2,8,32], index: 3, kind: input, shape index: {}]
  %s4 = inlined_call_operand.hbm [shape: f32[2,8,128], index: 4, kind: input, shape index: {}]
  %s5 = inlined_call_operand.hbm [shape: f32[2,8,128], index: 5, kind: output, shape index: {}]
  %s6 = sld [smem:[#allocation0]]
  $region73: #{tpu_custom_call.1} parent=0
    _
  %s8 = ssub.s32 1, %s6
  %s9 = scalar_select 0, %s8, %s6
  %10 = sst [smem:[#allocation6]] %s0
  %11 = sst [smem:[#allocation7]] %s1
  $region1: #{tpu_custom_call.1} parent=0
    #allocation8 [shape = 'u8[8192]{0}', space=vmem, size = 0x2000, scoped, tag = 'input window, operand 2']
    #allocation9 [shape = 's32[2]{0}', space=sflag, size = 0x8, scoped, tag = 'scoped memory for tpu_custom_call.1']
    #allocation10 [shape = 's32[2]{0}', space=sflag, size = 0x8, scoped, tag = 'scoped memory for tpu_custom_call.1']
    #allocation11 [shape = 'u8[8192]{0}', space=vmem, size = 0x2000, scoped, tag = 'input window, operand 3']
    #allocation12 [shape = 's32[2]{0}', space=sflag, size = 0x8, scoped, tag = 'scoped memory for tpu_custom_call.1']
    #allocation13 [shape = 'u8[8192]{0}', space=vmem, size = 0x2000, scoped, tag = 'input window, operand 4']
    #allocation14 [shape = 'u8[8192]{0}', space=vmem, size = 0x2000, scoped, tag = 'output window, operand 0']
    %12 = vsyncpa [#allocation9], 0
    %s13 = scalar_lea.sflag [#allocation9], 1
    %14 = vsyncpa %s13, 0
    %15 = vsyncpa [#allocation12], 0
    %s16 = scalar_lea.sflag [#allocation12], 1
    %17 = vsyncpa %s16, 0
    %18 = vsyncpa [#allocation10], 0
    %s19 = scalar_lea.sflag [#allocation10], 1
    %20 = vsyncpa %s19, 0
    loop: start=0, step=1, limit=4
    $region2: #{tpu_custom_call.1} parent=1 // loop_pre_header
      _
    $region3: #{tpu_custom_call.1} parent=1 // loop_header
      %s22 = sphi 0, %s26
      %p23 = scmp.ge.s32.totalorder %s22, 4
      %s29 = sphi 0, %s48
      %s30 = sphi 0, %s44
      %s31 = sphi 0, %s40
      %s32 = sphi 0, %s29
      %s33 = sphi 0, %s30
      %s34 = sphi 0, %s31
      %s35 = sphi 0, %s32
      %s36 = sphi 0, %s33
      %s37 = sphi 0, %s34
      %s49 = sphi 0, %s49
      %s51 = sphi 0, %s49
      %s52 = sphi 0, %s51
      %s66 = sphi 0, %s52
      %s70 = sphi 0, %s70
      %s72 = sphi 0, %s70
      %s73 = sphi 0, %s72
      %s87 = sphi 0, %s73
      %s95 = sphi 0, %s97
      %s98 = sphi 0, %s95
      %s99 = sphi 0, %s98
      %s115 = sphi 0, %s99
      %s123 = sphi 0, %s125
      %s126 = sphi 0, %s123
      %s127 = sphi 0, %s126
      %s143 = sphi 0, %s127
      %s151 = sphi 0, %s153
      %s154 = sphi 0, %s151
      %s155 = sphi 0, %s154
      %s171 = sphi 0, %s155
      %s179 = sphi 0, %s181
      %s182 = sphi 0, %s179
      %s183 = sphi 0, %s182
      %s199 = sphi 0, %s183
    $region4: #{tpu_custom_call.1} parent=1 // loop_header_branch
      %25 = sbr.rel (%p23) target = $region8
    $region5: #{tpu_custom_call.1} parent=1 // loop_body
      %s27 = ssub.s32 %s22, 1
      %s28 = ssub.s32 %s22, 2
      %s38 = sadd.s32 1, %s31
      %p39 = scmp.ge.s32.totalorder %s38, 1
      %s40 = scalar_select %p39, 0, %s38
      %s41 = sadd.s32 1, %s30
      %s42 = scalar_select %p39, %s41, %s30
      %p43 = scmp.ge.s32.totalorder %s42, 1
      %s44 = scalar_select %p43, 0, %s42
      %s45 = sadd.s32 1, %s29
      %s46 = scalar_select %p43, %s45, %s29
      %p47 = scmp.ge.s32.totalorder %s46, 2
      %s48 = scalar_select %p47, 0, %s46
      %s50 = sadd.s32 %s49, 1
      %p53 = scmp.eq.s32.totalorder %s22, 1
      %p54 = scmp.ne.s32.totalorder %s49, %s51
      %p55 = scmp.eq.s32.totalorder %s22, 0
      %p56 = por %p54, %p55
      %p57 = scmp.ne.s32.totalorder %s49, %s51
      %p58 = scmp.eq.s32.totalorder %s27, 1
      %p59 = por %p57, %p58
      %p60 = scmp.ne.s32.totalorder %s51, %s52
      %p61 = scmp.eq.s32.totalorder %s27, 0
      %p62 = por %p60, %p61
      %p63 = scmp.ne.s32.totalorder %s51, %s52
      %p64 = scmp.eq.s32.totalorder %s28, 1
      %p65 = por %p63, %p64
      %p67 = scmp.ne.s32.totalorder %s52, %s66
      %p68 = scmp.eq.s32.totalorder %s28, 0
      %p69 = por %p67, %p68
      %s71 = sadd.s32 %s70, 1
      %p74 = scmp.eq.s32.totalorder %s22, 1
      %p75 = scmp.ne.s32.totalorder %s70, %s72
      %p76 = scmp.eq.s32.totalorder %s22, 0
      %p77 = por %p75, %p76
      %p78 = scmp.ne.s32.totalorder %s70, %s72
      %p79 = scmp.eq.s32.totalorder %s27, 1
      %p80 = por %p78, %p79
      %p81 = scmp.ne.s32.totalorder %s72, %s73
      %p82 = scmp.eq.s32.totalorder %s27, 0
      %p83 = por %p81, %p82
      %p84 = scmp.ne.s32.totalorder %s72, %s73
      %p85 = scmp.eq.s32.totalorder %s28, 1
      %p86 = por %p84, %p85
      %p88 = scmp.ne.s32.totalorder %s73, %s87
      %p89 = scmp.eq.s32.totalorder %s28, 0
      %p90 = por %p88, %p89
      %s91 = ssub.s32 %s29, %s48
      %s92 = ssub.s32 %s30, %s44
      %s93 = sor.u32 %s91, %s92
      %p94 = scmp.eq.s32.totalorder %s93, 0
      %s96 = sadd.s32 %s95, 1
      %s97 = scalar_select %p94, %s95, %s96
      %p100 = pneg %p94
      %p101 = scmp.eq.s32.totalorder %s22, 1
      %p102 = por %p100, %p101
      %p103 = scmp.ne.s32.totalorder %s95, %s98
      %p104 = scmp.eq.s32.totalorder %s22, 0
      %p105 = por %p103, %p104
      %p106 = scmp.ne.s32.totalorder %s95, %s98
      %p107 = scmp.eq.s32.totalorder %s27, 1
      %p108 = por %p106, %p107
      %p109 = scmp.ne.s32.totalorder %s98, %s99
      %p110 = scmp.eq.s32.totalorder %s27, 0
      %p111 = por %p109, %p110
      %p112 = scmp.ne.s32.totalorder %s98, %s99
      %p113 = scmp.eq.s32.totalorder %s28, 1
      %p114 = por %p112, %p113
      %p116 = scmp.ne.s32.totalorder %s99, %s115
      %p117 = scmp.eq.s32.totalorder %s28, 0
      %p118 = por %p116, %p117
      %s119 = ssub.s32 %s29, %s48
      %s120 = ssub.s32 %s31, %s40
      %s121 = sor.u32 %s119, %s120
      %p122 = scmp.eq.s32.totalorder %s121, 0
      %s124 = sadd.s32 %s123, 1
      %s125 = scalar_select %p122, %s123, %s124
      %p128 = pneg %p122
      %p129 = scmp.eq.s32.totalorder %s22, 1
      %p130 = por %p128, %p129
      %p131 = scmp.ne.s32.totalorder %s123, %s126
      %p132 = scmp.eq.s32.totalorder %s22, 0
      %p133 = por %p131, %p132
      %p134 = scmp.ne.s32.totalorder %s123, %s126
      %p135 = scmp.eq.s32.totalorder %s27, 1
      %p136 = por %p134, %p135
      %p137 = scmp.ne.s32.totalorder %s126, %s127
      %p138 = scmp.eq.s32.totalorder %s27, 0
      %p139 = por %p137, %p138
      %p140 = scmp.ne.s32.totalorder %s126, %s127
      %p141 = scmp.eq.s32.totalorder %s28, 1
      %p142 = por %p140, %p141
      %p144 = scmp.ne.s32.totalorder %s127, %s143
      %p145 = scmp.eq.s32.totalorder %s28, 0
      %p146 = por %p144, %p145
      %s147 = ssub.s32 %s29, %s48
      %s148 = ssub.s32 %s31, %s40
      %s149 = sor.u32 %s147, %s148
      %p150 = scmp.eq.s32.totalorder %s149, 0
      %s152 = sadd.s32 %s151, 1
      %s153 = scalar_select %p150, %s151, %s152
      %p156 = pneg %p150
      %p157 = scmp.eq.s32.totalorder %s22, 1
      %p158 = por %p156, %p157
      %p159 = scmp.ne.s32.totalorder %s151, %s154
      %p160 = scmp.eq.s32.totalorder %s22, 0
      %p161 = por %p159, %p160
      %p162 = scmp.ne.s32.totalorder %s151, %s154
      %p163 = scmp.eq.s32.totalorder %s27, 1
      %p164 = por %p162, %p163
      %p165 = scmp.ne.s32.totalorder %s154, %s155
      %p166 = scmp.eq.s32.totalorder %s27, 0
      %p167 = por %p165, %p166
      %p168 = scmp.ne.s32.totalorder %s154, %s155
      %p169 = scmp.eq.s32.totalorder %s28, 1
      %p170 = por %p168, %p169
      %p172 = scmp.ne.s32.totalorder %s155, %s171
      %p173 = scmp.eq.s32.totalorder %s28, 0
      %p174 = por %p172, %p173
      %s175 = ssub.s32 %s29, %s48
      %s176 = ssub.s32 %s30, %s44
      %s177 = sor.u32 %s175, %s176
      %p178 = scmp.eq.s32.totalorder %s177, 0
      %s180 = sadd.s32 %s179, 1
      %s181 = scalar_select %p178, %s179, %s180
      %p184 = pneg %p178
      %p185 = scmp.eq.s32.totalorder %s22, 1
      %p186 = por %p184, %p185
      %p187 = scmp.ne.s32.totalorder %s179, %s182
      %p188 = scmp.eq.s32.totalorder %s22, 0
      %p189 = por %p187, %p188
      %p190 = scmp.ne.s32.totalorder %s179, %s182
      %p191 = scmp.eq.s32.totalorder %s27, 1
      %p192 = por %p190, %p191
      %p193 = scmp.ne.s32.totalorder %s182, %s183
      %p194 = scmp.eq.s32.totalorder %s27, 0
      %p195 = por %p193, %p194
      %p196 = scmp.ne.s32.totalorder %s182, %s183
      %p197 = scmp.eq.s32.totalorder %s28, 1
      %p198 = por %p196, %p197
      %p200 = scmp.ne.s32.totalorder %s183, %s199
      %p201 = scmp.eq.s32.totalorder %s28, 0
      %p202 = por %p200, %p201
      %p203 = scmp.le.s32.totalorder 1, %s22
      %p204 = scmp.lt.s32.totalorder %s22, 3
      %p205 = pnand %p203, %p204
      %p206 = pneg %p205
      // Predicated region
      $region9: #{tpu_custom_call.1} parent=5 // pred_check
        _
      $region10: #{tpu_custom_call.1} parent=5 // pred_check_branch
        %208 = sbr.rel (%p205) target = $region12
      $region11: #{tpu_custom_call.1} parent=5 // pred_region
        %s209 = ssub.s32 %s22, 1
        // Predicated region
        $region13: #{tpu_custom_call.1} parent=11 // pred_check
          %p210 = pneg %p62
        $region14: #{tpu_custom_call.1} parent=11 // pred_check_branch
          %212 = sbr.rel (%p210) target = $region16
        $region15: #{tpu_custom_call.1} parent=11 // pred_region
          _
        $region16: #{tpu_custom_call.1} parent=11 // pred_fallthru
          _
        // Predicated region
        $region17: #{tpu_custom_call.1} parent=11 // pred_check
          %p213 = pneg %p83
        $region18: #{tpu_custom_call.1} parent=11 // pred_check_branch
          %215 = sbr.rel (%p213) target = $region20
        $region19: #{tpu_custom_call.1} parent=11 // pred_region
          _
        $region20: #{tpu_custom_call.1} parent=11 // pred_fallthru
          _
      $region12: #{tpu_custom_call.1} parent=5 // pred_fallthru
        _
      %p216 = scmp.lt.s32.totalorder %s22, 2
      // Predicated region
      $region21: #{tpu_custom_call.1} parent=5 // pred_check
        %p217 = pneg %p216
      $region22: #{tpu_custom_call.1} parent=5 // pred_check_branch
        %219 = sbr.rel (%p217) target = $region24
      $region23: #{tpu_custom_call.1} parent=5 // pred_region
        // Predicated region
        $region25: #{tpu_custom_call.1} parent=23 // pred_check
          %p220 = pneg %p105
        $region26: #{tpu_custom_call.1} parent=23 // pred_check_branch
          %222 = sbr.rel (%p220) target = $region28
        $region27: #{tpu_custom_call.1} parent=23 // pred_region
          %s223 = sand.u32 %s95, 1
          %s224 = scalar_lea.sflag [#allocation9], %s223
          %s225 = sand.u32 %s95, 1
          %s226 = smul.addr %s225, 8
          %s227 = scalar_lea.vmem [#allocation8], %s226
          %229 = vsyncadd %s224, 0
          %s230 = sadd.s32 %s30, %s29
          %s231 = smul.addr %s230, 8
          %s232 = scalar_lea.hbm %s2, %s231
          %s234 = sshll.u32 %s232, 4
          %s235 = int_to_ptr.hbm [resolvable:$true] %s234
          %s236 = sshll.u32 %s227, 4
          %s237 = int_to_ptr.vmem [resolvable:$true] %s236
          %239 = dma.hbm_to_vmem [thread:$0]  %s235, 128, %s237, %s224
        $region28: #{tpu_custom_call.1} parent=23 // pred_fallthru
          _
        // Predicated region
        $region29: #{tpu_custom_call.1} parent=23 // pred_check
          %p240 = pneg %p133
        $region30: #{tpu_custom_call.1} parent=23 // pred_check_branch
          %242 = sbr.rel (%p240) target = $region32
        $region31: #{tpu_custom_call.1} parent=23 // pred_region
          %s243 = sand.u32 %s22, 1
          %s244 = scalar_lea.sflag [#allocation12], %s243
          %s245 = sand.u32 %s123, 1
          %s246 = smul.addr %s245, 8
          %s247 = scalar_lea.vmem [#allocation11], %s246
          %249 = vsyncadd %s244, 0
          %s250 = sadd.s32 %s31, %s29
          %s251 = smul.addr %s250, 8
          %s252 = scalar_lea.hbm %s3, %s251
          %s254 = sshll.u32 %s252, 4
          %s255 = int_to_ptr.hbm [resolvable:$true] %s254
          %s256 = sshll.u32 %s247, 4
          %s257 = int_to_ptr.vmem [resolvable:$true] %s256
          %259 = dma.hbm_to_vmem [thread:$0]  %s255, 128, %s257, %s244
        $region32: #{tpu_custom_call.1} parent=23 // pred_fallthru
          _
        // Predicated region
        $region33: #{tpu_custom_call.1} parent=23 // pred_check
          %p260 = pneg %p161
        $region34: #{tpu_custom_call.1} parent=23 // pred_check_branch
          %262 = sbr.rel (%p260) target = $region36
        $region35: #{tpu_custom_call.1} parent=23 // pred_region
          %s263 = sand.u32 %s22, 1
          %s264 = scalar_lea.sflag [#allocation12], %s263
          %s265 = sand.u32 %s151, 1
          %s266 = smul.addr %s265, 8
          %s267 = scalar_lea.vmem [#allocation13], %s266
          %269 = vsyncadd %s264, 0
          %s270 = sadd.s32 %s31, %s29
          %s271 = smul.addr %s270, 8
          %s272 = scalar_lea.hbm %s4, %s271
          %s274 = sshll.u32 %s272, 4
          %s275 = int_to_ptr.hbm [resolvable:$true] %s274
          %s276 = sshll.u32 %s267, 4
          %s277 = int_to_ptr.vmem [resolvable:$true] %s276
          %279 = dma.hbm_to_vmem [thread:$0]  %s275, 128, %s277, %s264
        $region36: #{tpu_custom_call.1} parent=23 // pred_fallthru
          _
      $region24: #{tpu_custom_call.1} parent=5 // pred_fallthru
        _
      %p280 = scmp.le.s32.totalorder 1, %s22
      %p281 = scmp.lt.s32.totalorder %s22, 3
      %p282 = pnand %p280, %p281
      %p283 = pneg %p282
      // Predicated region
      $region37: #{tpu_custom_call.1} parent=5 // pred_check
        _
      $region38: #{tpu_custom_call.1} parent=5 // pred_check_branch
        %285 = sbr.rel (%p282) target = $region40
      $region39: #{tpu_custom_call.1} parent=5 // pred_region
        %s286 = ssub.s32 %s22, 1
        %s287 = sand.u32 %s98, 1
        %s288 = scalar_lea.sflag [#allocation9], %s287
        %s289 = sand.u32 %s98, 1
        %s290 = smul.addr %s289, 8
        %s291 = scalar_lea.vmem [#allocation8], %s290
        // Predicated region
        $region41: #{tpu_custom_call.1} parent=39 // pred_check
          %p292 = pneg %p111
        $region42: #{tpu_custom_call.1} parent=39 // pred_check_branch
          %294 = sbr.rel (%p292) target = $region44
        $region43: #{tpu_custom_call.1} parent=39 // pred_region
          %296 = dma.done %s288, 128
        $region44: #{tpu_custom_call.1} parent=39 // pred_fallthru
          _
        %s297 = sand.u32 %s27, 1
        %s298 = scalar_lea.sflag [#allocation12], %s297
        %s299 = sand.u32 %s126, 1
        %s300 = smul.addr %s299, 8
        %s301 = scalar_lea.vmem [#allocation11], %s300
        // Predicated region
        $region45: #{tpu_custom_call.1} parent=39 // pred_check
          %p302 = pneg %p139
        $region46: #{tpu_custom_call.1} parent=39 // pred_check_branch
          %304 = sbr.rel (%p302) target = $region48
        $region47: #{tpu_custom_call.1} parent=39 // pred_region
          %306 = dma.done %s298, 128
        $region48: #{tpu_custom_call.1} parent=39 // pred_fallthru
          _
        %s307 = sand.u32 %s27, 1
        %s308 = scalar_lea.sflag [#allocation12], %s307
        %s309 = sand.u32 %s154, 1
        %s310 = smul.addr %s309, 8
        %s311 = scalar_lea.vmem [#allocation13], %s310
        // Predicated region
        $region49: #{tpu_custom_call.1} parent=39 // pred_check
          %p312 = pneg %p167
        $region50: #{tpu_custom_call.1} parent=39 // pred_check_branch
          %314 = sbr.rel (%p312) target = $region52
        $region51: #{tpu_custom_call.1} parent=39 // pred_region
          %316 = dma.done %s308, 128
        $region52: #{tpu_custom_call.1} parent=39 // pred_fallthru
          _
        %p317 = pneg %p62
        %p318 = pneg %p59
        %p319 = pneg %p83
        %p320 = pneg %p80
        %s321 = sand.u32 %s98, 1
        %s322 = scalar_lea.sflag [#allocation9], %s321
        %s323 = sand.u32 %s98, 1
        %s324 = smul.addr %s323, 8
        %s325 = scalar_lea.vmem [#allocation8], %s324
        %p326 = pneg %p111
        %p327 = pneg %p108
        %s328 = sand.u32 %s27, 1
        %s329 = scalar_lea.sflag [#allocation12], %s328
        %s330 = sand.u32 %s126, 1
        %s331 = smul.addr %s330, 8
        %s332 = scalar_lea.vmem [#allocation11], %s331
        %p333 = pneg %p139
        %p334 = pneg %p136
        %s335 = sand.u32 %s27, 1
        %s336 = scalar_lea.sflag [#allocation12], %s335
        %s337 = sand.u32 %s154, 1
        %s338 = smul.addr %s337, 8
        %s339 = scalar_lea.vmem [#allocation13], %s338
        %p340 = pneg %p167
        %p341 = pneg %p164
        %p342 = pneg %p195
        %p343 = pneg %p192
        %s344 = sand.u32 %s182, 1
        %s345 = scalar_lea.sflag [#allocation10], %s344
        %s346 = sand.u32 %s182, 1
        %s347 = smul.addr %s346, 8
        %s348 = scalar_lea.vmem [#allocation14], %s347
        %p349 = scmp.eq.s32.totalorder %s34, 0
        // Predicated region
        $region53: #{tpu_custom_call.1} parent=39 // pred_check
          %p350 = pneg %p349
        $region54: #{tpu_custom_call.1} parent=39 // pred_check_branch
          %352 = sbr.rel (%p350) target = $region56
        $region55: #{tpu_custom_call.1} parent=39 // pred_region
          %v353 = vld [vmem:[%s291] sm:$0xff]
          %s354 = sld [smem:[#allocation6]]
          %v355 = vstv %s354
          %v356 = vmul.f32 %v353, %v355
          %vm357 = vcmask 261120
          %358 = vst.msk [vmem:[#allocation2] sm:$0xff] %vm357, %v356
          %vm359 = vcmask 7168
          %360 = vst.msk [vmem:[#allocation3] sm:$0xff] %vm359, -inf
          %361 = vst.msk [vmem:[#allocation4] sm:$0xff] %vm359, 0.0
          %362 = vst [vmem:[#allocation5] sm:$0xff] 0.0
        $region56: #{tpu_custom_call.1} parent=39 // pred_fallthru
          _
        %v363 = vld [vmem:[%s301] sm:$0xff]
        %v364 = vld [vmem:[#allocation2] sm:$0xff]
        %vm365 = vcmask 261120
        %v367 = vsel %vm365, %v364, 0
        %v370 = vsel %vm365, %v363, 0
        %372 = vmatpush.xpose.msra.mxu0 0.0
        %373 = vmatpush.xpose.msra.mxu0 0.0
        %374 = vmatpush.xpose.msra.mxu0 0.0
        %375 = vmatpush.xpose.msra.mxu0 0.0
        %376 = vmatpush.xpose.msra.mxu0 0.0
        %377 = vmatpush.xpose.msra.mxu0 0.0
        %378 = vmatpush.xpose.msra.mxu0 0.0
        %379 = vmatpush.xpose.msra.mxu0 0.0
        %380 = vmatpush.xpose.msra.mxu0 0.0
        %381 = vmatpush.xpose.msra.mxu0 0.0
        %382 = vmatpush.xpose.msra.mxu0 0.0
        %383 = vmatpush.xpose.msra.mxu0 0.0
        %384 = vmatpush.xpose.msra.mxu0 0.0
        %385 = vmatpush.xpose.msra.mxu0 0.0
        %386 = vmatpush.xpose.msra.mxu0 0.0
        %387 = vmatpush.xpose.msra.mxu0 %v370
        %388 = vmatmul.f32.gmra.mxu0 %v367
        %v389 = vpop.f32.mrf.mxu0
        %v390 = vadd.f32 0.0, %v389
        %391 = vdwg.mxu0
        %v392 = vld [vmem:[%s311] sm:$0xff]
        %v393 = vld [vmem:[#allocation3] sm:$0xff]
        %vm394 = vcmask 64512
        %v395 = vsel %vm394, %v390, -inf
        %396 = vmax.xlane.f32.xlu0 %v395
        %v397 = vpop.xlane.xlu0 %396
        %v398 = vmax.f32 %v393, %v397
        %v399 = vsub.f32 %v393, %v398
        %v400 = vmul.f32 %v399, 1.442695
        %v401 = vpow.pop %v400
        %403 = vset.pattern.permute.xlu0 0
        %404 = vperm.xlu0 %403, %v398
        %v405 = vpop.permute.xlu0 %404
        %v407 = vsub.f32 %v390, %v405
        %v408 = vmul.f32 %v407, 1.442695
        %v409 = vpow.pop %v408
        %v410 = vld [vmem:[#allocation4] sm:$0xff]
        %v411 = vmul.f32 %v401, %v410
        %v412 = vsel %vm394, %v409, 0.0
        %413 = vadd.xlane.f32.xlu0 %v412
        %v414 = vpop.xlane.xlu0 %413
        %v415 = vadd.f32 %v411, %v414
        %vm416 = vcmask 7168
        %417 = vst.msk [vmem:[#allocation4] sm:$0xff] %vm416, %v415
        %v418 = vld [vmem:[#allocation5] sm:$0xff]
        %420 = vset.pattern.permute.xlu0 0
        %421 = vperm.xlu0 %420, %v401
        %v422 = vpop.permute.xlu0 %421
        %v424 = vmul.f32 %v422, %v418
        %v426 = vsel %vm394, %v409, 0
        %428 = vmatpush.msra.mxu0 0.0
        %429 = vmatpush.msra.mxu0 0.0
        %430 = vmatpush.msra.mxu0 0.0
        %431 = vmatpush.msra.mxu0 0.0
        %432 = vmatpush.msra.mxu0 0.0
        %433 = vmatpush.msra.mxu0 0.0
        %434 = vmatpush.msra.mxu0 0.0
        %435 = vmatpush.msra.mxu0 0.0
        %436 = vmatpush.msra.mxu0 0.0
        %437 = vmatpush.msra.mxu0 0.0
        %438 = vmatpush.msra.mxu0 0.0
        %439 = vmatpush.msra.mxu0 0.0
        %440 = vmatpush.msra.mxu0 0.0
        %441 = vmatpush.msra.mxu0 0.0
        %442 = vmatpush.msra.mxu0 0.0
        %443 = vmatpush.msra.mxu0 %v392
        %444 = vmatmul.f32.gmra.mxu0 %v426
        %v445 = vpop.f32.mrf.mxu0
        %v446 = vadd.f32 0.0, %v445
        %447 = vdwg.mxu0
        %v448 = vadd.f32 %v424, %v446
        %449 = vst [vmem:[#allocation5] sm:$0xff] %v448
        %450 = vst.msk [vmem:[#allocation3] sm:$0xff] %vm416, %v398
        // Predicated region
        $region57: #{tpu_custom_call.1} parent=39 // pred_check
          %p451 = pneg %p349
        $region58: #{tpu_custom_call.1} parent=39 // pred_check_branch
          %453 = sbr.rel (%p451) target = $region60
        $region59: #{tpu_custom_call.1} parent=39 // pred_region
          %v454 = vld [vmem:[#allocation4] sm:$0xff]
          %v455 = vrcp.pop %v454
          %v456 = vmul.f32 %v454, %v455
          %v457 = vsub.f32 2.0, %v456
          %v458 = vmul.f32 %v455, %v457
          %v459 = vld [vmem:[#allocation5] sm:$0xff]
          %461 = vset.pattern.permute.xlu0 0
          %462 = vperm.xlu0 %461, %v458
          %v463 = vpop.permute.xlu0 %462
          %v465 = vmul.f32 %v459, %v463
          %466 = vst [vmem:[%s348] sm:$0xff] %v465
        $region60: #{tpu_custom_call.1} parent=39 // pred_fallthru
          _
        %s467 = sand.u32 %s182, 1
        %s468 = scalar_lea.sflag [#allocation10], %s467
        %s469 = sand.u32 %s182, 1
        %s470 = smul.addr %s469, 8
        %s471 = scalar_lea.vmem [#allocation14], %s470
        // Predicated region
        $region61: #{tpu_custom_call.1} parent=39 // pred_check
          %p472 = pneg %p192
        $region62: #{tpu_custom_call.1} parent=39 // pred_check_branch
          %474 = sbr.rel (%p472) target = $region64
        $region63: #{tpu_custom_call.1} parent=39 // pred_region
          %476 = vsyncadd %s468, 0
          %s477 = sadd.s32 %s33, %s32
          %s478 = smul.addr %s477, 8
          %s479 = scalar_lea.hbm %s5, %s478
          %s481 = sshll.u32 %s471, 4
          %s482 = int_to_ptr.vmem [resolvable:$true] %s481
          %s483 = sshll.u32 %s479, 4
          %s484 = int_to_ptr.hbm [resolvable:$true] %s483
          %486 = dma.vmem_to_hbm [thread:$0]  %s482, 128, %s484, %s468
        $region64: #{tpu_custom_call.1} parent=39 // pred_fallthru
          _
      $region40: #{tpu_custom_call.1} parent=5 // pred_fallthru
        _
      %p487 = scmp.le.s32.totalorder 2, %s22
      // Predicated region
      $region65: #{tpu_custom_call.1} parent=5 // pred_check
        %p488 = pneg %p487
      $region66: #{tpu_custom_call.1} parent=5 // pred_check_branch
        %490 = sbr.rel (%p488) target = $region68
      $region67: #{tpu_custom_call.1} parent=5 // pred_region
        %s491 = ssub.s32 %s22, 2
        // Predicated region
        $region69: #{tpu_custom_call.1} parent=67 // pred_check
          %p492 = pneg %p198
        $region70: #{tpu_custom_call.1} parent=67 // pred_check_branch
          %494 = sbr.rel (%p492) target = $region72
        $region71: #{tpu_custom_call.1} parent=67 // pred_region
          %s495 = sand.u32 %s183, 1
          %s496 = scalar_lea.sflag [#allocation10], %s495
          %s497 = sand.u32 %s183, 1
          %s498 = smul.addr %s497, 8
          %s499 = scalar_lea.vmem [#allocation14], %s498
          %501 = dma.done %s496, 128
        $region72: #{tpu_custom_call.1} parent=67 // pred_fallthru
          _
      $region68: #{tpu_custom_call.1} parent=5 // pred_fallthru
        _
    $region6: #{tpu_custom_call.1} parent=1 // loop_footer
      %s26 = sadd.s32 1, %s22
    $region7: #{tpu_custom_call.1} parent=1 // loop_footer_branch
      %21 = sbr.rel target = $region3
    $region8: #{tpu_custom_call.1} parent=1 // loop_exit
      _
    %502 = vsyncpa [#allocation9], 1
    %s503 = scalar_lea.sflag [#allocation9], 1
    %504 = vsyncpa %s503, 1
    %505 = vsyncpa [#allocation12], 1
    %s506 = scalar_lea.sflag [#allocation12], 1
    %507 = vsyncpa %s506, 1
    %508 = vsyncpa [#allocation10], 1
    %s509 = scalar_lea.sflag [#allocation10], 1
    %510 = vsyncpa %s509, 1

</llo_original>
